<compile_context>
chip_gen: v5e
topology: v5e:2x2
jax: 0.10.0
libtpu: 0.0.40
codegen_flags: <defaults>
</compile_context>

<pallas_src>
import jax
import jax.numpy as jnp
from jax.experimental import pallas as pl
from jax.experimental.pallas import tpu as pltpu  # noqa: F401  (TPU backend)


def linear_kernel(x_ref, wt_ref, b_ref, o_ref):
    # x: (B, K), wt: (K, N) already MXU-ready, b: (1, N)  ->  o: (B, N)
    acc = jnp.dot(x_ref[...], wt_ref[...], preferred_element_type=jnp.float32)
    o_ref[...] = (acc + b_ref[...]).astype(o_ref.dtype)


def make_linear(w, b):
    """w: (N, K) f32 (torch.nn.Linear layout), b: (N,) f32.

    Returns a jitted fn x:(B,K) -> (B,N).  All weight/bias layout work happens
    here, once, at init time; the hot path only touches x.
    """
    wt = jnp.asarray(w).T                 # (K, N)  MXU-ready, done once
    b2 = jnp.asarray(b).reshape(1, -1)    # (1, N)  broadcast row, done once
    K, N = wt.shape

    @jax.jit
    def linear_pallas(x):
        B = x.shape[0]
        cost = pl.CostEstimate(
            flops=2 * B * K * N,
            transcendentals=0,
            bytes_accessed=4 * (B * K + K * N + N + B * N),
        )
        return pl.pallas_call(
            linear_kernel,
            out_shape=jax.ShapeDtypeStruct((B, N), x.dtype),
            # Full-array blocks: no padding needed, (8,128) rule waived when
            # the block covers the whole array.  Single block, no grid.
            in_specs=[
                pl.BlockSpec((B, K), lambda: (0, 0)),
                pl.BlockSpec((K, N), lambda: (0, 0)),
                pl.BlockSpec((1, N), lambda: (0, 0)),
            ],
            out_specs=pl.BlockSpec((B, N), lambda: (0, 0)),
            cost_estimate=cost,
        )(x, wt, b2)

    return linear_pallas


if __name__ == "__main__":
    key = jax.random.PRNGKey(0)
    k_x, k_w, k_b = jax.random.split(key, 3)

    B, IN, OUT = 8, 300, 10  # nn.Linear(300, 10)

    # Deterministic parameter init mimicking torch.nn.Linear default:
    # U(-1/sqrt(in_features), 1/sqrt(in_features))
    bound = 1.0 / jnp.sqrt(jnp.float32(IN))
    w = jax.random.uniform(k_w, (OUT, IN), jnp.float32, -bound, bound)
    b = jax.random.uniform(k_b, (OUT,), jnp.float32, -bound, bound)

    x = jax.random.normal(k_x, (B, IN), jnp.float32)

    linear = make_linear(w, b)          # one-time weight layout
    out = linear(x)                     # hot path: one pallas_call, no pads
    jax.block_until_ready(out)

    # Sanity check against plain JAX reference.
    ref = x @ w.T + b
    assert out.shape == (B, OUT)
    assert jnp.allclose(out, ref, atol=1e-5, rtol=1e-5)

    print("KERNEL_OK")
</pallas_src>

<mosaic_0001>
module attributes {stable_mosaic.version = 11 : i64} {
  func.func @linear_kernel(%arg0: memref<8x300xf32, #tpu.memory_space<vmem>>, %arg1: memref<300x10xf32, #tpu.memory_space<vmem>>, %arg2: memref<1x10xf32, #tpu.memory_space<vmem>>, %arg3: memref<8x10xf32, #tpu.memory_space<vmem>>) attributes {dimension_semantics = [], scalar_prefetch = 0 : i64, scratch_operands = 0 : i64, tpu.core_type = #tpu.core_type<tc>} {
    %c0 = arith.constant 0 : index
    %c0_0 = arith.constant 0 : index
    %0 = vector.load %arg0[%c0, %c0_0] : memref<8x300xf32, #tpu.memory_space<vmem>>, vector<8x300xf32>
    %c0_1 = arith.constant 0 : index
    %c0_2 = arith.constant 0 : index
    %1 = vector.load %arg1[%c0_1, %c0_2] : memref<300x10xf32, #tpu.memory_space<vmem>>, vector<300x10xf32>
    %cst = arith.constant dense<0.000000e+00> : vector<8x10xf32>
    %2 = tpu.matmul %0, %1, %cst {dimension_numbers = #tpu.dot_dimension_numbers<[1], [0], [0], [1], [0, 0, 1, 1], [], []>} : vector<8x300xf32>, vector<300x10xf32>, vector<8x10xf32> -> vector<8x10xf32>
    %c0_3 = arith.constant 0 : index
    %c0_4 = arith.constant 0 : index
    %3 = vector.load %arg2[%c0_3, %c0_4] : memref<1x10xf32, #tpu.memory_space<vmem>>, vector<1x10xf32>
    %4 = vector.broadcast %3 : vector<1x10xf32> to vector<8x10xf32>
    %5 = arith.addf %2, %4 : vector<8x10xf32>
    %c0_5 = arith.constant 0 : index
    %c0_6 = arith.constant 0 : index
    %6 = vector.load %arg3[%c0_5, %c0_6] : memref<8x10xf32, #tpu.memory_space<vmem>>, vector<8x10xf32>
    tpu.vector_store %arg3[%c0_5, %c0_6], %5 {strides = array<i32>} : memref<8x10xf32, #tpu.memory_space<vmem>>, vector<8x10xf32>,
    return
  }
}

</mosaic_0001>

<llo_original>
// kernel: linear_pallas.1
$region0: #{linear_pallas.1}
  #allocation0 [shape = 'u32[]', space=smem, size = 0x4, offset = 0x4, fixed_abs, tag = 'smem constant byte address 0x4 - core index']
  #allocation1 [shape = 'u32[72,128]{1,0:T(1,128)}', space=vmem, size = 0x9000, scoped, tag = 'internal scratch']
  %s0 = inlined_call_operand.hbm [shape: f32[8,300], index: 0, kind: input, shape index: {}]
  %s1 = inlined_call_operand.hbm [shape: f32[300,10], index: 1, kind: input, shape index: {}]
  %s2 = inlined_call_operand.vmem [shape: f32[1,10], index: 2, kind: input, shape index: {}]
  %s3 = inlined_call_operand.hbm [shape: f32[8,10], index: 3, kind: output, shape index: {}]
  %s4 = sld [smem:[#allocation0]]
  $region30: #{linear_pallas.1} parent=0
    _
  %s6 = ssub.s32 1, %s4
  %s7 = scalar_select 0, %s6, %s4
  $region1: #{linear_pallas.1} parent=0
    #allocation2 [shape = 'u8[12288]{0}', space=vmem, size = 0x3000, scoped, tag = 'input window, operand 0, single buffered']
    #allocation3 [shape = 's32[1]{0}', space=sflag, size = 0x4, scoped, tag = 'scoped memory for linear_pallas.1']
    #allocation4 [shape = 's32[1]{0}', space=sflag, size = 0x4, scoped, tag = 'scoped memory for linear_pallas.1']
    #allocation5 [shape = 'u8[155648]{0}', space=vmem, size = 0x26000, scoped, tag = 'input window, operand 1, single buffered']
    #allocation6 [shape = 's32[1]{0}', space=sflag, size = 0x4, scoped, tag = 'scoped memory for linear_pallas.1']
    #allocation7 [shape = 'u8[4096]{0}', space=vmem, size = 0x1000, scoped, tag = 'output window, operand 0, single buffered']
    %8 = vsyncpa [#allocation3], 0
    %9 = vsyncpa [#allocation6], 0
    %10 = vsyncpa [#allocation4], 0
    // Predicated region
    $region2: #{linear_pallas.1} parent=1 // pred_check
      _
    $region3: #{linear_pallas.1} parent=1 // pred_check_branch
      %12 = sbr.rel (0) target = $region5
    $region4: #{linear_pallas.1} parent=1 // pred_region
      %14 = vsyncadd [#allocation3], 0
      %s16 = sshll.u32 %s0, 4
      %s17 = int_to_ptr.hbm [resolvable:$true] %s16
      %s18 = sshll.u32 [#allocation2], 4
      %s19 = int_to_ptr.vmem [resolvable:$true] %s18
      %21 = dma.hbm_to_vmem [thread:$0]  %s17, 384, %s19, [#allocation3]
    $region5: #{linear_pallas.1} parent=1 // pred_fallthru
      _
    // Predicated region
    $region6: #{linear_pallas.1} parent=1 // pred_check
      _
    $region7: #{linear_pallas.1} parent=1 // pred_check_branch
      %23 = sbr.rel (0) target = $region9
    $region8: #{linear_pallas.1} parent=1 // pred_region
      %25 = vsyncadd [#allocation6], 0
      %s26 = sshll.u32 %s1, 4
      %s27 = int_to_ptr.hbm [resolvable:$true] %s26
      %s28 = sshll.u32 [#allocation5], 4
      %s29 = int_to_ptr.vmem [resolvable:$true] %s28
      %34 = dma.hbm_to_vmem [thread:$0]  %s27, 4864, %s29, [#allocation6], 128, 128, 8
    $region9: #{linear_pallas.1} parent=1 // pred_fallthru
      _
    // Predicated region
    $region10: #{linear_pallas.1} parent=1 // pred_check
      _
    $region11: #{linear_pallas.1} parent=1 // pred_check_branch
      %36 = sbr.rel (0) target = $region13
    $region12: #{linear_pallas.1} parent=1 // pred_region
      _
    $region13: #{linear_pallas.1} parent=1 // pred_fallthru
      _
    // Predicated region
    $region14: #{linear_pallas.1} parent=1 // pred_check
      _
    $region15: #{linear_pallas.1} parent=1 // pred_check_branch
      %38 = sbr.rel (0) target = $region17
    $region16: #{linear_pallas.1} parent=1 // pred_region
      %40 = dma.done [#allocation3], 384
    $region17: #{linear_pallas.1} parent=1 // pred_fallthru
      _
    // Predicated region
    $region18: #{linear_pallas.1} parent=1 // pred_check
      _
    $region19: #{linear_pallas.1} parent=1 // pred_check_branch
      %42 = sbr.rel (0) target = $region21
    $region20: #{linear_pallas.1} parent=1 // pred_region
      %44 = dma.done [#allocation6], 4864
    $region21: #{linear_pallas.1} parent=1 // pred_fallthru
      _
    %v45 = vld [vmem:[#allocation2] sm:$0xff]
    %v46 = vld [vmem:[#allocation2 + $0x8] sm:$0xff]
    %v47 = vld [vmem:[#allocation2 + $0x10] sm:$0xff]
    %v48 = vld [vmem:[#allocation5] sm:$0xff]
    %v49 = vld [vmem:[#allocation5 + $0x8] sm:$0xff]
    %v50 = vld [vmem:[#allocation5 + $0x10] sm:$0xff]
    %v51 = vld [vmem:[#allocation5 + $0x18] sm:$0xff]
    %v52 = vld [vmem:[#allocation5 + $0x20] sm:$0xff]
    %v53 = vld [vmem:[#allocation5 + $0x28] sm:$0xff]
    %v54 = vld [vmem:[#allocation5 + $0x30] sm:$0xff]
    %v55 = vld [vmem:[#allocation5 + $0x38] sm:$0xff]
    %v56 = vld [vmem:[#allocation5 + $0x40] sm:$0xff]
    %v57 = vld [vmem:[#allocation5 + $0x48] sm:$0xff]
    %v58 = vld [vmem:[#allocation5 + $0x50] sm:$0xff]
    %v59 = vld [vmem:[#allocation5 + $0x58] sm:$0xff]
    %v60 = vld [vmem:[#allocation5 + $0x60] sm:$0xff]
    %v61 = vld [vmem:[#allocation5 + $0x68] sm:$0xff]
    %v62 = vld [vmem:[#allocation5 + $0x70] sm:$0xff]
    %v63 = vld [vmem:[#allocation5 + $0x78] sm:$0xff]
    %v64 = vld [vmem:[#allocation5 + $0x80] sm:$0xff]
    %v65 = vld [vmem:[#allocation5 + $0x88] sm:$0xff]
    %v66 = vld [vmem:[#allocation5 + $0x90] sm:$0xff]
    %v67 = vld [vmem:[#allocation5 + $0x98] sm:$0xff]
    %v68 = vld [vmem:[#allocation5 + $0xa0] sm:$0xff]
    %v69 = vld [vmem:[#allocation5 + $0xa8] sm:$0xff]
    %v70 = vld [vmem:[#allocation5 + $0xb0] sm:$0xff]
    %v71 = vld [vmem:[#allocation5 + $0xb8] sm:$0xff]
    %v72 = vld [vmem:[#allocation5 + $0xc0] sm:$0xff]
    %v73 = vld [vmem:[#allocation5 + $0xc8] sm:$0xff]
    %v74 = vld [vmem:[#allocation5 + $0xd0] sm:$0xff]
    %v75 = vld [vmem:[#allocation5 + $0xd8] sm:$0xff]
    %v76 = vld [vmem:[#allocation5 + $0xe0] sm:$0xff]
    %v77 = vld [vmem:[#allocation5 + $0xe8] sm:$0xff]
    %v78 = vld [vmem:[#allocation5 + $0xf0] sm:$0xff]
    %v79 = vld [vmem:[#allocation5 + $0xf8] sm:$0xff]
    %v80 = vld [vmem:[#allocation5 + $0x100] sm:$0xff]
    %v81 = vld [vmem:[#allocation5 + $0x108] sm:$0xff]
    %v82 = vld [vmem:[#allocation5 + $0x110] sm:$0xff]
    %v83 = vld [vmem:[#allocation5 + $0x118] sm:$0xff]
    %v84 = vld [vmem:[#allocation5 + $0x120] sm:$0xff]
    %v85 = vld [vmem:[#allocation5 + $0x128] sm:$0xf]
    %v86 = vld [vmem:[%s2] sm:$0x1]
    %v88 = vperm.slane %v86, 0
    %vm90 = vcmask 359424
    %v92 = vsel %vm90, %v47, 0
    %vm94 = vcmask 1043456
    %v96 = vsel %vm94, %v85, 0
    %98 = vmatpush.msra.mxu0 %v63
    %99 = vmatpush.msra.mxu0 %v62
    %100 = vmatpush.msra.mxu0 %v61
    %101 = vmatpush.msra.mxu0 %v60
    %102 = vmatpush.msra.mxu0 %v59
    %103 = vmatpush.msra.mxu0 %v58
    %104 = vmatpush.msra.mxu0 %v57
    %105 = vmatpush.msra.mxu0 %v56
    %106 = vmatpush.msra.mxu0 %v55
    %107 = vmatpush.msra.mxu0 %v54
    %108 = vmatpush.msra.mxu0 %v53
    %109 = vmatpush.msra.mxu0 %v52
    %110 = vmatpush.msra.mxu0 %v51
    %111 = vmatpush.msra.mxu0 %v50
    %112 = vmatpush.msra.mxu0 %v49
    %113 = vmatpush.msra.mxu0 %v48
    %114 = vmatmul.f32.gmra.mxu0 %v45
    %v115 = vpop.f32.mrf.mxu0
    %v116 = vadd.f32 %v88, %v115
    %117 = vdwg.mxu0
    %118 = vmatpush.msra.mxu0 %v79
    %119 = vmatpush.msra.mxu0 %v78
    %120 = vmatpush.msra.mxu0 %v77
    %121 = vmatpush.msra.mxu0 %v76
    %122 = vmatpush.msra.mxu0 %v75
    %123 = vmatpush.msra.mxu0 %v74
    %124 = vmatpush.msra.mxu0 %v73
    %125 = vmatpush.msra.mxu0 %v72
    %126 = vmatpush.msra.mxu0 %v71
    %127 = vmatpush.msra.mxu0 %v70
    %128 = vmatpush.msra.mxu0 %v69
    %129 = vmatpush.msra.mxu0 %v68
    %130 = vmatpush.msra.mxu0 %v67
    %131 = vmatpush.msra.mxu0 %v66
    %132 = vmatpush.msra.mxu0 %v65
    %133 = vmatpush.msra.mxu0 %v64
    %134 = vmatmul.f32.gmra.mxu0 %v46
    %v135 = vpop.f32.mrf.mxu0
    %v136 = vadd.f32 %v116, %v135
    %137 = vdwg.mxu0
    %138 = vmatpush.msra.mxu0 0.0
    %139 = vmatpush.msra.mxu0 0.0
    %140 = vmatpush.msra.mxu0 0.0
    %141 = vmatpush.msra.mxu0 0.0
    %142 = vmatpush.msra.mxu0 0.0
    %143 = vmatpush.msra.mxu0 0.0
    %144 = vmatpush.msra.mxu0 0.0
    %145 = vmatpush.msra.mxu0 0.0
    %146 = vmatpush.msra.mxu0 0.0
    %147 = vmatpush.msra.mxu0 0.0
    %148 = vmatpush.msra.mxu0 %v96
    %149 = vmatpush.msra.mxu0 %v84
    %150 = vmatpush.msra.mxu0 %v83
    %151 = vmatpush.msra.mxu0 %v82
    %152 = vmatpush.msra.mxu0 %v81
    %153 = vmatpush.msra.mxu0 %v80
    %154 = vmatmul.f32.gmra.mxu0 %v92
    %v155 = vpop.f32.mrf.mxu0
    %v156 = vadd.f32 %v136, %v155
    %157 = vdwg.mxu0
    %vm158 = vcmask 80896
    %159 = vst.msk [vmem:[#allocation7] sm:$0xff] %vm158, %v156
    // Predicated region
    $region22: #{linear_pallas.1} parent=1 // pred_check
      _
    $region23: #{linear_pallas.1} parent=1 // pred_check_branch
      %161 = sbr.rel (0) target = $region25
    $region24: #{linear_pallas.1} parent=1 // pred_region
      %163 = vsyncadd [#allocation4], 0
      %s165 = sshll.u32 [#allocation7], 4
      %s166 = int_to_ptr.vmem [resolvable:$true] %s165
      %s167 = sshll.u32 %s3, 4
      %s168 = int_to_ptr.hbm [resolvable:$true] %s167
      %170 = dma.vmem_to_hbm [thread:$0]  %s166, 128, %s168, [#allocation4]
    $region25: #{linear_pallas.1} parent=1 // pred_fallthru
      _
    // Predicated region
    $region26: #{linear_pallas.1} parent=1 // pred_check
      _
    $region27: #{linear_pallas.1} parent=1 // pred_check_branch
      %172 = sbr.rel (0) target = $region29
    $region28: #{linear_pallas.1} parent=1 // pred_region
      %174 = dma.done [#allocation4], 128
    $region29: #{linear_pallas.1} parent=1 // pred_fallthru
      _
    %175 = vsyncpa [#allocation3], 1
    %176 = vsyncpa [#allocation6], 1
    %177 = vsyncpa [#allocation4], 1

</llo_original>
